<compile_context>
chip_gen: v7x
topology: tpu7x:2x2x1
jax: 0.10.0
libtpu: 0.0.40
codegen_flags: <defaults>
</compile_context>

<pallas_src>
import functools

import jax
import jax.numpy as jnp
from jax import lax
from jax.experimental import pallas as pl
from jax.experimental.pallas import tpu as pltpu


# ---------------------------------------------------------------------------
# Kernels
# ---------------------------------------------------------------------------
def _weighted_sum(feat_ref, w_ref, chunk_rows):
    """sum_{n, r} feat[0, n, r, :] * w[r, :]  ->  (1, 128) float32.

    feat_ref : (1, n_blk, R, 128) VMEM, narrow dtype (bf16)
    w_ref    : (R, 128)           VMEM, same dtype as feat (fc weight,
               replicated over the spatial axis, pre-scaled by 1/(N*H*W))

    Multiplies in the feature dtype (packed bf16 on v6e/v7x VPU) and widens to
    float32 only at the sublane reduce / accumulate.  Chunked over R with an
    unrolled fori_loop so live vregs stay bounded for large blocks.
    """
    n_blk = feat_ref.shape[1]
    r_total = feat_ref.shape[2]
    n_chunks = r_total // chunk_rows          # wrapper guarantees divisibility

    def chunk_body(c, acc):
        r0 = pl.multiple_of(c * chunk_rows, chunk_rows)
        w = w_ref[pl.ds(r0, chunk_rows), :]
        part = acc
        for n in range(n_blk):                # small static unroll over instances
            f = feat_ref[0, n, pl.ds(r0, chunk_rows), :]
            part = part + jnp.sum((f * w).astype(jnp.float32),
                                  axis=0, keepdims=True)
        return part

    return lax.fori_loop(0, n_chunks, chunk_body,
                         jnp.zeros((1, 128), jnp.float32), unroll=True)


def bag_head_whole_bag_kernel(feat_ref, w_ref, out_ref, *, chunk_rows):
    """grid=(B,): the whole bag fits in one feature block.

    No accumulator scratch, no init/finalize phases, no scalar prefetch.
    out_ref : (1, 1, 128) f32  -- per-lane partial sums (lane reduce in wrapper).
    """
    out_ref[...] = _weighted_sum(feat_ref, w_ref, chunk_rows).reshape(out_ref.shape)


def bag_head_chunked_kernel(feat_ref, w_ref, out_ref, acc_ref, *, chunk_rows):
    """grid=(B, N // n_blk): n_blk instances per step, accumulated over steps.

    NOTE (correctness): the instance-chunk axis MUST be the innermost grid axis
    and the out index_map constant over it so Pallas keeps the output block
    resident; do not reorder the grid axes.
    """
    s = pl.program_id(1)

    @pl.when(s == 0)
    def _():
        acc_ref[...] = jnp.zeros_like(acc_ref)

    acc_ref[...] += _weighted_sum(feat_ref, w_ref, chunk_rows)

    @pl.when(s == pl.num_programs(1) - 1)
    def _():
        out_ref[...] = acc_ref[...].reshape(out_ref.shape)


# ---------------------------------------------------------------------------
# Wrapper
# ---------------------------------------------------------------------------
def _largest_divisor_at_most(n, cap):
    for d in range(min(n, cap), 0, -1):
        if n % d == 0:
            return d
    return 1


def _vmem_limit_bytes():
    """Per-generation scoped-VMEM limit: ~3/4 of physical, capped at 96 MiB."""
    try:
        info = pltpu.get_tpu_info()
        phys = int(getattr(info, "vmem_capacity_bytes", 64 << 20))
    except Exception:                          # conservative fallback (v7x-sized)
        phys = 64 << 20
    return max(32 << 20, min(96 << 20, (phys * 3) // 4))


def bag_classifier_head(features, fc_w, fc_b):
    """features: (B, N, C, H, W) post-backbone features (bf16 or f32, native
    contiguous layout — no transpose needed).
    fc_w: (C, 1) float32, fc_b: (1,) float32.  Returns (B, 1) float32."""
    B, N, C, H, W = features.shape
    HW = H * W
    T = C * HW
    assert T % 128 == 0, "C*H*W must be a multiple of 128 (C=2560 guarantees it)"
    R = T // 128

    # Free reshape of the contiguous tensor: lane axis is 128-dense.
    feat = features.reshape(B, N, R, 128)

    # fc weight replicated over spatial positions in the same flat (c*HW + hw)
    # order as the features, with the 1/(N*H*W) mean folded in; kept in the
    # feature dtype so the multiply runs as packed bf16 on v6e/v7x.
    # (Tiny; hoist/cache outside the hot path if calling repeatedly.)
    inv_count = 1.0 / float(N * HW)
    w_rep = (jnp.broadcast_to(fc_w.reshape(C, 1).astype(jnp.float32) * inv_count,
                              (C, HW))
             .reshape(R, 128).astype(feat.dtype))

    # --- per-generation block sizing --------------------------------------
    vmem_limit = _vmem_limit_bytes()
    inst_bytes = R * 128 * jnp.dtype(feat.dtype).itemsize
    w_bytes = R * 128 * jnp.dtype(w_rep.dtype).itemsize
    # Feature blocks are double-buffered; leave headroom for the (small, bf16)
    # weight buffers, output block and pipeline misc.
    feat_budget = max(2 * inst_bytes, vmem_limit - 2 * w_bytes - (4 << 20))
    n_blk = 1
    for d in range(1, N + 1):
        if N % d == 0 and 2 * d * inst_bytes <= feat_budget:
            n_blk = d

    # Chunk the R axis inside the kernel to bound live vregs.
    chunk_rows = _largest_divisor_at_most(R, 512)

    if n_blk == N:
        # Whole bag per step: simplest kernel, no scratch, no phases.
        kernel = functools.partial(bag_head_whole_bag_kernel,
                                   chunk_rows=chunk_rows)
        grid_spec = pltpu.PrefetchScalarGridSpec(
            num_scalar_prefetch=0,
            grid=(B,),
            in_specs=[
                pl.BlockSpec((1, N, R, 128), lambda b: (b, 0, 0, 0)),
                pl.BlockSpec((R, 128), lambda b: (0, 0)),      # resident weight
            ],
            out_specs=pl.BlockSpec((1, 1, 128), lambda b: (b, 0, 0)),
        )
        dims = ("parallel",)
    else:
        n_steps = N // n_blk
        kernel = functools.partial(bag_head_chunked_kernel,
                                   chunk_rows=chunk_rows)
        grid_spec = pltpu.PrefetchScalarGridSpec(
            num_scalar_prefetch=0,
            grid=(B, n_steps),                   # bags parallel, chunks reduce
            in_specs=[
                pl.BlockSpec((1, n_blk, R, 128), lambda b, s: (b, s, 0, 0)),
                pl.BlockSpec((R, 128), lambda b, s: (0, 0)),   # resident weight
            ],
            out_specs=pl.BlockSpec((1, 1, 128), lambda b, s: (b, 0, 0)),
            scratch_shapes=[pltpu.VMEM((1, 128), jnp.float32)],
        )
        dims = ("parallel", "arbitrary")

    out = pl.pallas_call(
        kernel,
        out_shape=jax.ShapeDtypeStruct((B, 1, 128), jnp.float32),
        grid_spec=grid_spec,
        compiler_params=pltpu.CompilerParams(
            dimension_semantics=dims,
            vmem_limit_bytes=vmem_limit),
    )(feat, w_rep)

    # Cross-lane reduce of the per-bag (128,) partial sums + bias (tiny XLA op).
    logits = jnp.sum(out[:, 0, :], axis=-1, keepdims=True) + fc_b.astype(jnp.float32)
    return logits                                              # (B, 1) float32


# ---------------------------------------------------------------------------
# Demo / self-test
# ---------------------------------------------------------------------------
if __name__ == "__main__":
    # Small shapes consistent with the module: bag batch B=2, instances per
    # bag N=4, EfficientNet-b7 feature dim C=2560, post-backbone H'=W'=4.
    B, N, C, Hf, Wf = 2, 4, 2560, 4, 4

    key = jax.random.PRNGKey(0)
    k_feat, k_w, k_b = jax.random.split(key, 3)

    # TODO(synk): EfficientNet-b7 backbone not translated; synthesize its
    # output directly (bf16, as a real backbone would emit).
    features = jax.random.normal(k_feat, (B, N, C, Hf, Wf), dtype=jnp.bfloat16)

    # fc params of nn.Linear(2560, 1): torch weight (1, 2560) used transposed.
    fc_w = jax.random.normal(k_w, (C, 1), dtype=jnp.float32) * 0.02
    fc_b = jax.random.normal(k_b, (1,), dtype=jnp.float32) * 0.02

    out = jax.block_until_ready(bag_classifier_head(features, fc_w, fc_b))

    # Pure-JAX reference of the torch forward (post-backbone part), f32.
    feats_f32 = features.astype(jnp.float32)
    pooled_ref = jnp.mean(feats_f32, axis=(3, 4))      # (B, N, C)  avg_pool
    bag_ref = jnp.mean(pooled_ref, axis=1)             # (B, C)     mean over N
    ref = bag_ref @ fc_w + fc_b                        # (B, 1)     fc

    assert out.shape == (B, 1) and out.dtype == jnp.float32
    assert jnp.allclose(out, ref, rtol=5e-3, atol=5e-3), (out, ref)
    print("KERNEL_OK")
</pallas_src>

<mosaic_0001>
module attributes {stable_mosaic.version = 11 : i64} {
  func.func @bag_head_whole_bag_kernel(%arg0: i32, %arg1: memref<1x4x320x128xbf16, #tpu.memory_space<vmem>>, %arg2: memref<320x128xbf16, #tpu.memory_space<vmem>>, %arg3: memref<1x1x128xf32, #tpu.memory_space<vmem>>) attributes {dimension_semantics = [#tpu.dimension_semantics<parallel>], iteration_bounds = array<i64: 2>, scalar_prefetch = 0 : i64, scratch_operands = 0 : i64, tpu.core_type = #tpu.core_type<tc>, window_params = [{transform_indices = @transform_0, window_bounds = array<i64: 1, 4, 320, 128>}, {pipeline_mode = #tpu.pipeline_mode<synchronous>, transform_indices = @transform_1, window_bounds = array<i64: 320, 128>}, {transform_indices = @transform_2, window_bounds = array<i64: 1, 1, 128>}]} {
    %cst = arith.constant 0.000000e+00 : f32
    %0 = vector.broadcast %cst : f32 to vector<1x128xf32>
    %c0_i32 = arith.constant 0 : i32
    %c320_i32 = arith.constant 320 : i32
    %1 = arith.muli %c0_i32, %c320_i32 : i32
    %2 = tpu.assume_multiple %1, 320 : i32
    %3 = arith.index_cast %2 : i32 to index
    %c0 = arith.constant 0 : index
    %4 = vector.load %arg2[%3, %c0] : memref<320x128xbf16, #tpu.memory_space<vmem>>, vector<320x128xbf16>
    %c0_0 = arith.constant 0 : index
    %c0_1 = arith.constant 0 : index
    %5 = arith.index_cast %2 : i32 to index
    %c0_2 = arith.constant 0 : index
    %6 = vector.load %arg1[%c0_0, %c0_1, %5, %c0_2] : memref<1x4x320x128xbf16, #tpu.memory_space<vmem>>, vector<1x1x320x128xbf16>
    %7 = vector.shape_cast %6 : vector<1x1x320x128xbf16> to vector<320x128xbf16>
    %8 = arith.mulf %7, %4 : vector<320x128xbf16>
    %9 = arith.extf %8 : vector<320x128xbf16> to vector<320x128xf32>
    %cst_3 = arith.constant dense<0.000000e+00> : vector<128xf32>
    %10 = vector.multi_reduction <add>, %9, %cst_3 [0] : vector<320x128xf32> to vector<128xf32>
    %11 = vector.shape_cast %10 : vector<128xf32> to vector<1x128xf32>
    %12 = arith.addf %0, %11 : vector<1x128xf32>
    %c0_4 = arith.constant 0 : index
    %c1 = arith.constant 1 : index
    %13 = arith.index_cast %2 : i32 to index
    %c0_5 = arith.constant 0 : index
    %14 = vector.load %arg1[%c0_4, %c1, %13, %c0_5] : memref<1x4x320x128xbf16, #tpu.memory_space<vmem>>, vector<1x1x320x128xbf16>
    %15 = vector.shape_cast %14 : vector<1x1x320x128xbf16> to vector<320x128xbf16>
    %16 = arith.mulf %15, %4 : vector<320x128xbf16>
    %17 = arith.extf %16 : vector<320x128xbf16> to vector<320x128xf32>
    %cst_6 = arith.constant dense<0.000000e+00> : vector<128xf32>
    %18 = vector.multi_reduction <add>, %17, %cst_6 [0] : vector<320x128xf32> to vector<128xf32>
    %19 = vector.shape_cast %18 : vector<128xf32> to vector<1x128xf32>
    %20 = arith.addf %12, %19 : vector<1x128xf32>
    %c0_7 = arith.constant 0 : index
    %c2 = arith.constant 2 : index
    %21 = arith.index_cast %2 : i32 to index
    %c0_8 = arith.constant 0 : index
    %22 = vector.load %arg1[%c0_7, %c2, %21, %c0_8] : memref<1x4x320x128xbf16, #tpu.memory_space<vmem>>, vector<1x1x320x128xbf16>
    %23 = vector.shape_cast %22 : vector<1x1x320x128xbf16> to vector<320x128xbf16>
    %24 = arith.mulf %23, %4 : vector<320x128xbf16>
    %25 = arith.extf %24 : vector<320x128xbf16> to vector<320x128xf32>
    %cst_9 = arith.constant dense<0.000000e+00> : vector<128xf32>
    %26 = vector.multi_reduction <add>, %25, %cst_9 [0] : vector<320x128xf32> to vector<128xf32>
    %27 = vector.shape_cast %26 : vector<128xf32> to vector<1x128xf32>
    %28 = arith.addf %20, %27 : vector<1x128xf32>
    %c0_10 = arith.constant 0 : index
    %c3 = arith.constant 3 : index
    %29 = arith.index_cast %2 : i32 to index
    %c0_11 = arith.constant 0 : index
    %30 = vector.load %arg1[%c0_10, %c3, %29, %c0_11] : memref<1x4x320x128xbf16, #tpu.memory_space<vmem>>, vector<1x1x320x128xbf16>
    %31 = vector.shape_cast %30 : vector<1x1x320x128xbf16> to vector<320x128xbf16>
    %32 = arith.mulf %31, %4 : vector<320x128xbf16>
    %33 = arith.extf %32 : vector<320x128xbf16> to vector<320x128xf32>
    %cst_12 = arith.constant dense<0.000000e+00> : vector<128xf32>
    %34 = vector.multi_reduction <add>, %33, %cst_12 [0] : vector<320x128xf32> to vector<128xf32>
    %35 = vector.shape_cast %34 : vector<128xf32> to vector<1x128xf32>
    %36 = arith.addf %28, %35 : vector<1x128xf32>
    %c1_i32 = arith.constant 1 : i32
    %37 = vector.shape_cast %36 : vector<1x128xf32> to vector<1x1x128xf32>
    %c0_13 = arith.constant 0 : index
    %c0_14 = arith.constant 0 : index
    %c0_15 = arith.constant 0 : index
    %38 = vector.load %arg3[%c0_13, %c0_14, %c0_15] : memref<1x1x128xf32, #tpu.memory_space<vmem>>, vector<1x1x128xf32>
    tpu.vector_store %arg3[%c0_13, %c0_14, %c0_15], %37 {strides = array<i32>} : memref<1x1x128xf32, #tpu.memory_space<vmem>>, vector<1x1x128xf32>,
    return
  }
  func.func @transform_0(%arg0: i32) -> (i32, i32, i32, i32) {
    %c0_i32 = arith.constant 0 : i32
    %c0_i32_0 = arith.constant 0 : i32
    %c0_i32_1 = arith.constant 0 : i32
    %c0_i32_2 = arith.constant 0 : i32
    return %arg0, %c0_i32, %c0_i32_0, %c0_i32_1 : i32, i32, i32, i32
  }
  func.func @transform_1(%arg0: i32) -> (i32, i32) {
    %c0_i32 = arith.constant 0 : i32
    %c0_i32_0 = arith.constant 0 : i32
    %c0_i32_1 = arith.constant 0 : i32
    return %c0_i32, %c0_i32_0 : i32, i32
  }
  func.func @transform_2(%arg0: i32) -> (i32, i32, i32) {
    %c0_i32 = arith.constant 0 : i32
    %c0_i32_0 = arith.constant 0 : i32
    %c0_i32_1 = arith.constant 0 : i32
    return %arg0, %c0_i32, %c0_i32_0 : i32, i32, i32
  }
}

</mosaic_0001>

<llo_original>
// kernel: tpu_custom_call.1
$region0: #{tpu_custom_call.1}
  #allocation0 [shape = 'u32[]', space=smem, size = 0x4, offset = 0x4, fixed_abs, tag = 'smem constant byte address 0x4 - core index']
  #allocation1 [shape = 'u32[144,128]{1,0:T(1,128)}', space=vmem, size = 0x12000, scoped, tag = 'internal scratch']
  %s0 = inlined_call_operand.hbm [shape: bf16[2,4,320,128], index: 0, kind: input, shape index: {}]
  %s1 = inlined_call_operand.hbm [shape: bf16[320,128], index: 1, kind: input, shape index: {}]
  %s2 = inlined_call_operand.hbm [shape: f32[2,1,128], index: 2, kind: output, shape index: {}]
  %s3 = sld [smem:[#allocation0]]
  $region49: #{tpu_custom_call.1} parent=0
    _
  %s5 = ssub.s32 1, %s3
  %s6 = scalar_select 0, %s5, %s3
  $region1: #{tpu_custom_call.1} parent=0
    #allocation2 [shape = 'u8[655360]{0}', space=vmem, size = 0xa0000, scoped, tag = 'input window, operand 0']
    #allocation3 [shape = 's32[2]{0}', space=sflag, size = 0x8, scoped, tag = 'scoped memory for tpu_custom_call.1']
    #allocation4 [shape = 's32[2]{0}', space=sflag, size = 0x8, scoped, tag = 'scoped memory for tpu_custom_call.1']
    #allocation5 [shape = 'u8[81920]{0}', space=vmem, size = 0x14000, scoped, tag = 'input window, operand 1, single buffered']
    #allocation6 [shape = 's32[1]{0}', space=sflag, size = 0x4, scoped, tag = 'scoped memory for tpu_custom_call.1']
    #allocation7 [shape = 'u8[1024]{0}', space=vmem, size = 0x400, scoped, tag = 'output window, operand 0']
    %7 = vsyncpa [#allocation3], 0
    %s8 = scalar_lea.sflag [#allocation3], 1
    %9 = vsyncpa %s8, 0
    %10 = vsyncpa [#allocation6], 0
    %11 = vsyncpa [#allocation4], 0
    %s12 = scalar_lea.sflag [#allocation4], 1
    %13 = vsyncpa %s12, 0
    loop: start=0, step=1, limit=4
    $region2: #{tpu_custom_call.1} parent=1 // loop_pre_header
      _
    $region3: #{tpu_custom_call.1} parent=1 // loop_header
      %s15 = sphi 0, %s19
      %p16 = scmp.ge.s32.totalorder %s15, 4
      %s25 = sphi 0, %s27
      %s28 = sphi 0, %s25
      %s29 = sphi 0, %s28
      %s45 = sphi 0, %s29
      %s49 = sphi 0, %s49
      %s51 = sphi 0, %s49
      %s52 = sphi 0, %s51
      %s66 = sphi 0, %s52
      %s72 = sphi 0, %s74
      %s75 = sphi 0, %s72
      %s76 = sphi 0, %s75
      %s92 = sphi 0, %s76
    $region4: #{tpu_custom_call.1} parent=1 // loop_header_branch
      %18 = sbr.rel (%p16) target = $region8
    $region5: #{tpu_custom_call.1} parent=1 // loop_body
      %s20 = ssub.s32 %s15, 1
      %s21 = ssub.s32 %s15, 2
      %s22 = sadd.s32 %s15, 1
      %s23 = ssub.s32 %s15, %s22
      %p24 = scmp.eq.s32.totalorder %s23, 0
      %s26 = sadd.s32 %s25, 1
      %s27 = scalar_select %p24, %s25, %s26
      %p30 = pneg %p24
      %p31 = scmp.eq.s32.totalorder %s15, 1
      %p32 = por %p30, %p31
      %p33 = scmp.ne.s32.totalorder %s25, %s28
      %p34 = scmp.eq.s32.totalorder %s15, 0
      %p35 = por %p33, %p34
      %p36 = scmp.ne.s32.totalorder %s25, %s28
      %p37 = scmp.eq.s32.totalorder %s20, 1
      %p38 = por %p36, %p37
      %p39 = scmp.ne.s32.totalorder %s28, %s29
      %p40 = scmp.eq.s32.totalorder %s20, 0
      %p41 = por %p39, %p40
      %p42 = scmp.ne.s32.totalorder %s28, %s29
      %p43 = scmp.eq.s32.totalorder %s21, 1
      %p44 = por %p42, %p43
      %p46 = scmp.ne.s32.totalorder %s29, %s45
      %p47 = scmp.eq.s32.totalorder %s21, 0
      %p48 = por %p46, %p47
      %s50 = sadd.s32 %s49, 1
      %p53 = scmp.eq.s32.totalorder %s15, 1
      %p54 = scmp.ne.s32.totalorder %s49, %s51
      %p55 = scmp.eq.s32.totalorder %s15, 0
      %p56 = por %p54, %p55
      %p57 = scmp.ne.s32.totalorder %s49, %s51
      %p58 = scmp.eq.s32.totalorder %s20, 1
      %p59 = por %p57, %p58
      %p60 = scmp.ne.s32.totalorder %s51, %s52
      %p61 = scmp.eq.s32.totalorder %s20, 0
      %p62 = por %p60, %p61
      %p63 = scmp.ne.s32.totalorder %s51, %s52
      %p64 = scmp.eq.s32.totalorder %s21, 1
      %p65 = por %p63, %p64
      %p67 = scmp.ne.s32.totalorder %s52, %s66
      %p68 = scmp.eq.s32.totalorder %s21, 0
      %p69 = por %p67, %p68
      %s70 = ssub.s32 %s15, %s22
      %p71 = scmp.eq.s32.totalorder %s70, 0
      %s73 = sadd.s32 %s72, 1
      %s74 = scalar_select %p71, %s72, %s73
      %p77 = pneg %p71
      %p78 = scmp.eq.s32.totalorder %s15, 1
      %p79 = por %p77, %p78
      %p80 = scmp.ne.s32.totalorder %s72, %s75
      %p81 = scmp.eq.s32.totalorder %s15, 0
      %p82 = por %p80, %p81
      %p83 = scmp.ne.s32.totalorder %s72, %s75
      %p84 = scmp.eq.s32.totalorder %s20, 1
      %p85 = por %p83, %p84
      %p86 = scmp.ne.s32.totalorder %s75, %s76
      %p87 = scmp.eq.s32.totalorder %s20, 0
      %p88 = por %p86, %p87
      %p89 = scmp.ne.s32.totalorder %s75, %s76
      %p90 = scmp.eq.s32.totalorder %s21, 1
      %p91 = por %p89, %p90
      %p93 = scmp.ne.s32.totalorder %s76, %s92
      %p94 = scmp.eq.s32.totalorder %s21, 0
      %p95 = por %p93, %p94
      %p96 = scmp.le.s32.totalorder 1, %s15
      %p97 = scmp.lt.s32.totalorder %s15, 3
      %p98 = pnand %p96, %p97
      %p99 = pneg %p98
      // Predicated region
      $region9: #{tpu_custom_call.1} parent=5 // pred_check
        _
      $region10: #{tpu_custom_call.1} parent=5 // pred_check_branch
        %101 = sbr.rel (%p98) target = $region12
      $region11: #{tpu_custom_call.1} parent=5 // pred_region
        %s102 = ssub.s32 %s15, 1
        // Predicated region
        $region13: #{tpu_custom_call.1} parent=11 // pred_check
          %p103 = pneg %p62
        $region14: #{tpu_custom_call.1} parent=11 // pred_check_branch
          %105 = sbr.rel (%p103) target = $region16
        $region15: #{tpu_custom_call.1} parent=11 // pred_region
          %s107 = ssub.s32 2560, 2560
          %108 = vsyncadd [#allocation6], %s107
          %s109 = sshll.u32 [#allocation5], 4
          %s110 = int_to_ptr.vmem [resolvable:$true] %s109
          %115 = dma.hbm_to_vmem [thread:$0]  %s1, 2560, %s110, [#allocation6], 64, 64, 4
        $region16: #{tpu_custom_call.1} parent=11 // pred_fallthru
          _
      $region12: #{tpu_custom_call.1} parent=5 // pred_fallthru
        _
      %p116 = scmp.lt.s32.totalorder %s15, 2
      // Predicated region
      $region17: #{tpu_custom_call.1} parent=5 // pred_check
        %p117 = pneg %p116
      $region18: #{tpu_custom_call.1} parent=5 // pred_check_branch
        %119 = sbr.rel (%p117) target = $region20
      $region19: #{tpu_custom_call.1} parent=5 // pred_region
        // Predicated region
        $region21: #{tpu_custom_call.1} parent=19 // pred_check
          %p120 = pneg %p35
        $region22: #{tpu_custom_call.1} parent=19 // pred_check_branch
          %122 = sbr.rel (%p120) target = $region24
        $region23: #{tpu_custom_call.1} parent=19 // pred_region
          %s123 = sand.u32 %s25, 1
          %s124 = scalar_lea.sflag [#allocation3], %s123
          %s125 = sand.u32 %s25, 1
          %s126 = smul.addr %s125, 640
          %s127 = scalar_lea.vmem [#allocation2], %s126
          %s129 = ssub.s32 10240, 10240
          %130 = vsyncadd %s124, %s129
          %s131 = smul.addr %s15, 160
          %s132 = smul.addr %s131, 64
          %s133 = scalar_lea.hbm %s0, %s132
          %s134 = sshll.u32 %s127, 4
          %s135 = int_to_ptr.vmem [resolvable:$true] %s134
          %140 = dma.hbm_to_vmem [thread:$0]  %s133, 10240, %s135, %s124, 64, 64, 4
        $region24: #{tpu_custom_call.1} parent=19 // pred_fallthru
          _
      $region20: #{tpu_custom_call.1} parent=5 // pred_fallthru
        _
      %p141 = scmp.le.s32.totalorder 1, %s15
      %p142 = scmp.lt.s32.totalorder %s15, 3
      %p143 = pnand %p141, %p142
      %p144 = pneg %p143
      // Predicated region
      $region25: #{tpu_custom_call.1} parent=5 // pred_check
        _
      $region26: #{tpu_custom_call.1} parent=5 // pred_check_branch
        %146 = sbr.rel (%p143) target = $region28
      $region27: #{tpu_custom_call.1} parent=5 // pred_region
        %s147 = ssub.s32 %s15, 1
        %s148 = sand.u32 %s28, 1
        %s149 = scalar_lea.sflag [#allocation3], %s148
        %s150 = sand.u32 %s28, 1
        %s151 = smul.addr %s150, 640
        %s152 = scalar_lea.vmem [#allocation2], %s151
        // Predicated region
        $region29: #{tpu_custom_call.1} parent=27 // pred_check
          %p153 = pneg %p41
        $region30: #{tpu_custom_call.1} parent=27 // pred_check_branch
          %155 = sbr.rel (%p153) target = $region32
        $region31: #{tpu_custom_call.1} parent=27 // pred_region
          %156 = dma.done %s149, 10240
        $region32: #{tpu_custom_call.1} parent=27 // pred_fallthru
          _
        // Predicated region
        $region33: #{tpu_custom_call.1} parent=27 // pred_check
          %p157 = pneg %p62
        $region34: #{tpu_custom_call.1} parent=27 // pred_check_branch
          %159 = sbr.rel (%p157) target = $region36
        $region35: #{tpu_custom_call.1} parent=27 // pred_region
          %160 = dma.done [#allocation6], 2560
        $region36: #{tpu_custom_call.1} parent=27 // pred_fallthru
          _
        %s161 = sand.u32 %s28, 1
        %s162 = scalar_lea.sflag [#allocation3], %s161
        %s163 = sand.u32 %s28, 1
        %s164 = smul.addr %s163, 640
        %s165 = scalar_lea.vmem [#allocation2], %s164
        %p166 = pneg %p41
        %p167 = pneg %p38
        %p168 = pneg %p62
        %p169 = pneg %p59
        %p170 = pneg %p88
        %p171 = pneg %p85
        %s172 = sand.u32 %s75, 1
        %s173 = scalar_lea.sflag [#allocation4], %s172
        %s174 = sand.u32 %s75, 1
        %s175 = scalar_lea.vmem [#allocation7], %s174
        %v176 = vld [vmem:[#allocation5] sm:$0xf]
        %v177 = vld [vmem:[#allocation5 + $0x4] sm:$0xf]
        %v178 = vld [vmem:[#allocation5 + $0x8] sm:$0xf]
        %v179 = vld [vmem:[#allocation5 + $0xc] sm:$0xf]
        %v180 = vld [vmem:[#allocation5 + $0x10] sm:$0xf]
        %v181 = vld [vmem:[#allocation5 + $0x14] sm:$0xf]
        %v182 = vld [vmem:[#allocation5 + $0x18] sm:$0xf]
        %v183 = vld [vmem:[#allocation5 + $0x1c] sm:$0xf]
        %v184 = vld [vmem:[#allocation5 + $0x20] sm:$0xf]
        %v185 = vld [vmem:[#allocation5 + $0x24] sm:$0xf]
        %v186 = vld [vmem:[#allocation5 + $0x28] sm:$0xf]
        %v187 = vld [vmem:[#allocation5 + $0x2c] sm:$0xf]
        %v188 = vld [vmem:[#allocation5 + $0x30] sm:$0xf]
        %v189 = vld [vmem:[#allocation5 + $0x34] sm:$0xf]
        %v190 = vld [vmem:[#allocation5 + $0x38] sm:$0xf]
        %v191 = vld [vmem:[#allocation5 + $0x3c] sm:$0xf]
        %v192 = vld [vmem:[#allocation5 + $0x40] sm:$0xf]
        %v193 = vld [vmem:[#allocation5 + $0x44] sm:$0xf]
        %v194 = vld [vmem:[#allocation5 + $0x48] sm:$0xf]
        %v195 = vld [vmem:[#allocation5 + $0x4c] sm:$0xf]
        %v196 = vld [vmem:[#allocation5 + $0x50] sm:$0xf]
        %v197 = vld [vmem:[#allocation5 + $0x54] sm:$0xf]
        %v198 = vld [vmem:[#allocation5 + $0x58] sm:$0xf]
        %v199 = vld [vmem:[#allocation5 + $0x5c] sm:$0xf]
        %v200 = vld [vmem:[#allocation5 + $0x60] sm:$0xf]
        %v201 = vld [vmem:[#allocation5 + $0x64] sm:$0xf]
        %v202 = vld [vmem:[#allocation5 + $0x68] sm:$0xf]
        %v203 = vld [vmem:[#allocation5 + $0x6c] sm:$0xf]
        %v204 = vld [vmem:[#allocation5 + $0x70] sm:$0xf]
        %v205 = vld [vmem:[#allocation5 + $0x74] sm:$0xf]
        %v206 = vld [vmem:[#allocation5 + $0x78] sm:$0xf]
        %v207 = vld [vmem:[#allocation5 + $0x7c] sm:$0xf]
        %v208 = vld [vmem:[#allocation5 + $0x80] sm:$0xf]
        %v209 = vld [vmem:[#allocation5 + $0x84] sm:$0xf]
        %v210 = vld [vmem:[#allocation5 + $0x88] sm:$0xf]
        %v211 = vld [vmem:[#allocation5 + $0x8c] sm:$0xf]
        %v212 = vld [vmem:[#allocation5 + $0x90] sm:$0xf]
        %v213 = vld [vmem:[#allocation5 + $0x94] sm:$0xf]
        %v214 = vld [vmem:[#allocation5 + $0x98] sm:$0xf]
        %v215 = vld [vmem:[#allocation5 + $0x9c] sm:$0xf]
        %v216 = vld [vmem:[%s152] sm:$0xf]
        %v217 = vld [vmem:[%s152 + $0x4] sm:$0xf]
        %v218 = vld [vmem:[%s152 + $0x8] sm:$0xf]
        %v219 = vld [vmem:[%s152 + $0xc] sm:$0xf]
        %v220 = vld [vmem:[%s152 + $0x10] sm:$0xf]
        %v221 = vld [vmem:[%s152 + $0x14] sm:$0xf]
        %v222 = vld [vmem:[%s152 + $0x18] sm:$0xf]
        %v223 = vld [vmem:[%s152 + $0x1c] sm:$0xf]
        %v224 = vld [vmem:[%s152 + $0x20] sm:$0xf]
        %v225 = vld [vmem:[%s152 + $0x24] sm:$0xf]
        %v226 = vld [vmem:[%s152 + $0x28] sm:$0xf]
        %v227 = vld [vmem:[%s152 + $0x2c] sm:$0xf]
        %v228 = vld [vmem:[%s152 + $0x30] sm:$0xf]
        %v229 = vld [vmem:[%s152 + $0x34] sm:$0xf]
        %v230 = vld [vmem:[%s152 + $0x38] sm:$0xf]
        %v231 = vld [vmem:[%s152 + $0x3c] sm:$0xf]
        %v232 = vld [vmem:[%s152 + $0x40] sm:$0xf]
        %v233 = vld [vmem:[%s152 + $0x44] sm:$0xf]
        %v234 = vld [vmem:[%s152 + $0x48] sm:$0xf]
        %v235 = vld [vmem:[%s152 + $0x4c] sm:$0xf]
        %v236 = vld [vmem:[%s152 + $0x50] sm:$0xf]
        %v237 = vld [vmem:[%s152 + $0x54] sm:$0xf]
        %v238 = vld [vmem:[%s152 + $0x58] sm:$0xf]
        %v239 = vld [vmem:[%s152 + $0x5c] sm:$0xf]
        %v240 = vld [vmem:[%s152 + $0x60] sm:$0xf]
        %v241 = vld [vmem:[%s152 + $0x64] sm:$0xf]
        %v242 = vld [vmem:[%s152 + $0x68] sm:$0xf]
        %v243 = vld [vmem:[%s152 + $0x6c] sm:$0xf]
        %v244 = vld [vmem:[%s152 + $0x70] sm:$0xf]
        %v245 = vld [vmem:[%s152 + $0x74] sm:$0xf]
        %v246 = vld [vmem:[%s152 + $0x78] sm:$0xf]
        %v247 = vld [vmem:[%s152 + $0x7c] sm:$0xf]
        %v248 = vld [vmem:[%s152 + $0x80] sm:$0xf]
        %v249 = vld [vmem:[%s152 + $0x84] sm:$0xf]
        %v250 = vld [vmem:[%s152 + $0x88] sm:$0xf]
        %v251 = vld [vmem:[%s152 + $0x8c] sm:$0xf]
        %v252 = vld [vmem:[%s152 + $0x90] sm:$0xf]
        %v253 = vld [vmem:[%s152 + $0x94] sm:$0xf]
        %v254 = vld [vmem:[%s152 + $0x98] sm:$0xf]
        %v255 = vld [vmem:[%s152 + $0x9c] sm:$0xf]
        %v256 = vmul.bf16 %v216, %v176
        %v257 = vmul.bf16 %v217, %v177
        %v258 = vmul.bf16 %v218, %v178
        %v259 = vmul.bf16 %v219, %v179
        %v260 = vmul.bf16 %v220, %v180
        %v261 = vmul.bf16 %v221, %v181
        %v262 = vmul.bf16 %v222, %v182
        %v263 = vmul.bf16 %v223, %v183
        %v264 = vmul.bf16 %v224, %v184
        %v265 = vmul.bf16 %v225, %v185
        %v266 = vmul.bf16 %v226, %v186
        %v267 = vmul.bf16 %v227, %v187
        %v268 = vmul.bf16 %v228, %v188
        %v269 = vmul.bf16 %v229, %v189
        %v270 = vmul.bf16 %v230, %v190
        %v271 = vmul.bf16 %v231, %v191
        %v272 = vmul.bf16 %v232, %v192
        %v273 = vmul.bf16 %v233, %v193
        %v274 = vmul.bf16 %v234, %v194
        %v275 = vmul.bf16 %v235, %v195
        %v276 = vmul.bf16 %v236, %v196
        %v277 = vmul.bf16 %v237, %v197
        %v278 = vmul.bf16 %v238, %v198
        %v279 = vmul.bf16 %v239, %v199
        %v280 = vmul.bf16 %v240, %v200
        %v281 = vmul.bf16 %v241, %v201
        %v282 = vmul.bf16 %v242, %v202
        %v283 = vmul.bf16 %v243, %v203
        %v284 = vmul.bf16 %v244, %v204
        %v285 = vmul.bf16 %v245, %v205
        %v286 = vmul.bf16 %v246, %v206
        %v287 = vmul.bf16 %v247, %v207
        %v288 = vmul.bf16 %v248, %v208
        %v289 = vmul.bf16 %v249, %v209
        %v290 = vmul.bf16 %v250, %v210
        %v291 = vmul.bf16 %v251, %v211
        %v292 = vmul.bf16 %v252, %v212
        %v293 = vmul.bf16 %v253, %v213
        %v294 = vmul.bf16 %v254, %v214
        %v295 = vmul.bf16 %v255, %v215
        %v296 = vunpack.c.l.bf16 %v256
        %v297 = vunpack.c.l.bf16 %v257
        %v298 = vunpack.c.l.bf16 %v258
        %v299 = vunpack.c.l.bf16 %v259
        %v300 = vunpack.c.l.bf16 %v260
        %v301 = vunpack.c.l.bf16 %v261
        %v302 = vunpack.c.l.bf16 %v262
        %v303 = vunpack.c.l.bf16 %v263
        %v304 = vunpack.c.l.bf16 %v264
        %v305 = vunpack.c.l.bf16 %v265
        %v306 = vunpack.c.l.bf16 %v266
        %v307 = vunpack.c.l.bf16 %v267
        %v308 = vunpack.c.l.bf16 %v268
        %v309 = vunpack.c.l.bf16 %v269
        %v310 = vunpack.c.l.bf16 %v270
        %v311 = vunpack.c.l.bf16 %v271
        %v312 = vunpack.c.l.bf16 %v272
        %v313 = vunpack.c.l.bf16 %v273
        %v314 = vunpack.c.l.bf16 %v274
        %v315 = vunpack.c.l.bf16 %v275
        %v316 = vunpack.c.l.bf16 %v276
        %v317 = vunpack.c.l.bf16 %v277
        %v318 = vunpack.c.l.bf16 %v278
        %v319 = vunpack.c.l.bf16 %v279
        %v320 = vunpack.c.l.bf16 %v280
        %v321 = vunpack.c.l.bf16 %v281
        %v322 = vunpack.c.l.bf16 %v282
        %v323 = vunpack.c.l.bf16 %v283
        %v324 = vunpack.c.l.bf16 %v284
        %v325 = vunpack.c.l.bf16 %v285
        %v326 = vunpack.c.l.bf16 %v286
        %v327 = vunpack.c.l.bf16 %v287
        %v328 = vunpack.c.l.bf16 %v288
        %v329 = vunpack.c.l.bf16 %v289
        %v330 = vunpack.c.l.bf16 %v290
        %v331 = vunpack.c.l.bf16 %v291
        %v332 = vunpack.c.l.bf16 %v292
        %v333 = vunpack.c.l.bf16 %v293
        %v334 = vunpack.c.l.bf16 %v294
        %v335 = vunpack.c.l.bf16 %v295
        %v336 = vadd.f32 %v296, %v297
        %v337 = vadd.f32 %v336, %v298
        %v338 = vadd.f32 %v337, %v299
        %v339 = vadd.f32 %v338, %v300
        %v340 = vadd.f32 %v339, %v301
        %v341 = vadd.f32 %v340, %v302
        %v342 = vadd.f32 %v341, %v303
        %v343 = vadd.f32 %v342, %v304
        %v344 = vadd.f32 %v343, %v305
        %v345 = vadd.f32 %v344, %v306
        %v346 = vadd.f32 %v345, %v307
        %v347 = vadd.f32 %v346, %v308
        %v348 = vadd.f32 %v347, %v309
        %v349 = vadd.f32 %v348, %v310
        %v350 = vadd.f32 %v349, %v311
        %v351 = vadd.f32 %v350, %v312
        %v352 = vadd.f32 %v351, %v313
        %v353 = vadd.f32 %v352, %v314
        %v354 = vadd.f32 %v353, %v315
        %v355 = vadd.f32 %v354, %v316
        %v356 = vadd.f32 %v355, %v317
        %v357 = vadd.f32 %v356, %v318
        %v358 = vadd.f32 %v357, %v319
        %v359 = vadd.f32 %v358, %v320
        %v360 = vadd.f32 %v359, %v321
        %v361 = vadd.f32 %v360, %v322
        %v362 = vadd.f32 %v361, %v323
        %v363 = vadd.f32 %v362, %v324
        %v364 = vadd.f32 %v363, %v325
        %v365 = vadd.f32 %v364, %v326
        %v366 = vadd.f32 %v365, %v327
        %v367 = vadd.f32 %v366, %v328
        %v368 = vadd.f32 %v367, %v329
        %v369 = vadd.f32 %v368, %v330
        %v370 = vadd.f32 %v369, %v331
        %v371 = vadd.f32 %v370, %v332
        %v372 = vadd.f32 %v371, %v333
        %v373 = vadd.f32 %v372, %v334
        %v374 = vadd.f32 %v373, %v335
        %v375 = vrot.slane %v374, 4
        %v376 = vadd.f32 %v374, %v375
        %v377 = vrot.slane %v376, 2
        %v378 = vadd.f32 %v376, %v377
        %v379 = vrot.slane %v378, 1
        %v380 = vadd.f32 %v378, %v379
        %v381 = vadd.f32 %v380, 0.0
        %s382 = sadd.s32 0, 40
        %s383 = smul.addr %s382, 4
        %s384 = scalar_lea.vmem %s152, %s383 [#allocation2]
        %v385 = vld [vmem:[%s384] sm:$0xf]
        %v386 = vld [vmem:[%s384 + $0x4] sm:$0xf]
        %v387 = vld [vmem:[%s384 + $0x8] sm:$0xf]
        %v388 = vld [vmem:[%s384 + $0xc] sm:$0xf]
        %v389 = vld [vmem:[%s384 + $0x10] sm:$0xf]
        %v390 = vld [vmem:[%s384 + $0x14] sm:$0xf]
        %v391 = vld [vmem:[%s384 + $0x18] sm:$0xf]
        %v392 = vld [vmem:[%s384 + $0x1c] sm:$0xf]
        %v393 = vld [vmem:[%s384 + $0x20] sm:$0xf]
        %v394 = vld [vmem:[%s384 + $0x24] sm:$0xf]
        %v395 = vld [vmem:[%s384 + $0x28] sm:$0xf]
        %v396 = vld [vmem:[%s384 + $0x2c] sm:$0xf]
        %v397 = vld [vmem:[%s384 + $0x30] sm:$0xf]
        %v398 = vld [vmem:[%s384 + $0x34] sm:$0xf]
        %v399 = vld [vmem:[%s384 + $0x38] sm:$0xf]
        %v400 = vld [vmem:[%s384 + $0x3c] sm:$0xf]
        %v401 = vld [vmem:[%s384 + $0x40] sm:$0xf]
        %v402 = vld [vmem:[%s384 + $0x44] sm:$0xf]
        %v403 = vld [vmem:[%s384 + $0x48] sm:$0xf]
        %v404 = vld [vmem:[%s384 + $0x4c] sm:$0xf]
        %v405 = vld [vmem:[%s384 + $0x50] sm:$0xf]
        %v406 = vld [vmem:[%s384 + $0x54] sm:$0xf]
        %v407 = vld [vmem:[%s384 + $0x58] sm:$0xf]
        %v408 = vld [vmem:[%s384 + $0x5c] sm:$0xf]
        %v409 = vld [vmem:[%s384 + $0x60] sm:$0xf]
        %v410 = vld [vmem:[%s384 + $0x64] sm:$0xf]
        %v411 = vld [vmem:[%s384 + $0x68] sm:$0xf]
        %v412 = vld [vmem:[%s384 + $0x6c] sm:$0xf]
        %v413 = vld [vmem:[%s384 + $0x70] sm:$0xf]
        %v414 = vld [vmem:[%s384 + $0x74] sm:$0xf]
        %v415 = vld [vmem:[%s384 + $0x78] sm:$0xf]
        %v416 = vld [vmem:[%s384 + $0x7c] sm:$0xf]
        %v417 = vld [vmem:[%s384 + $0x80] sm:$0xf]
        %v418 = vld [vmem:[%s384 + $0x84] sm:$0xf]
        %v419 = vld [vmem:[%s384 + $0x88] sm:$0xf]
        %v420 = vld [vmem:[%s384 + $0x8c] sm:$0xf]
        %v421 = vld [vmem:[%s384 + $0x90] sm:$0xf]
        %v422 = vld [vmem:[%s384 + $0x94] sm:$0xf]
        %v423 = vld [vmem:[%s384 + $0x98] sm:$0xf]
        %v424 = vld [vmem:[%s384 + $0x9c] sm:$0xf]
        %v425 = vmul.bf16 %v385, %v176
        %v426 = vmul.bf16 %v386, %v177
        %v427 = vmul.bf16 %v387, %v178
        %v428 = vmul.bf16 %v388, %v179
        %v429 = vmul.bf16 %v389, %v180
        %v430 = vmul.bf16 %v390, %v181
        %v431 = vmul.bf16 %v391, %v182
        %v432 = vmul.bf16 %v392, %v183
        %v433 = vmul.bf16 %v393, %v184
        %v434 = vmul.bf16 %v394, %v185
        %v435 = vmul.bf16 %v395, %v186
        %v436 = vmul.bf16 %v396, %v187
        %v437 = vmul.bf16 %v397, %v188
        %v438 = vmul.bf16 %v398, %v189
        %v439 = vmul.bf16 %v399, %v190
        %v440 = vmul.bf16 %v400, %v191
        %v441 = vmul.bf16 %v401, %v192
        %v442 = vmul.bf16 %v402, %v193
        %v443 = vmul.bf16 %v403, %v194
        %v444 = vmul.bf16 %v404, %v195
        %v445 = vmul.bf16 %v405, %v196
        %v446 = vmul.bf16 %v406, %v197
        %v447 = vmul.bf16 %v407, %v198
        %v448 = vmul.bf16 %v408, %v199
        %v449 = vmul.bf16 %v409, %v200
        %v450 = vmul.bf16 %v410, %v201
        %v451 = vmul.bf16 %v411, %v202
        %v452 = vmul.bf16 %v412, %v203
        %v453 = vmul.bf16 %v413, %v204
        %v454 = vmul.bf16 %v414, %v205
        %v455 = vmul.bf16 %v415, %v206
        %v456 = vmul.bf16 %v416, %v207
        %v457 = vmul.bf16 %v417, %v208
        %v458 = vmul.bf16 %v418, %v209
        %v459 = vmul.bf16 %v419, %v210
        %v460 = vmul.bf16 %v420, %v211
        %v461 = vmul.bf16 %v421, %v212
        %v462 = vmul.bf16 %v422, %v213
        %v463 = vmul.bf16 %v423, %v214
        %v464 = vmul.bf16 %v424, %v215
        %v465 = vunpack.c.l.bf16 %v425
        %v466 = vunpack.c.l.bf16 %v426
        %v467 = vunpack.c.l.bf16 %v427
        %v468 = vunpack.c.l.bf16 %v428
        %v469 = vunpack.c.l.bf16 %v429
        %v470 = vunpack.c.l.bf16 %v430
        %v471 = vunpack.c.l.bf16 %v431
        %v472 = vunpack.c.l.bf16 %v432
        %v473 = vunpack.c.l.bf16 %v433
        %v474 = vunpack.c.l.bf16 %v434
        %v475 = vunpack.c.l.bf16 %v435
        %v476 = vunpack.c.l.bf16 %v436
        %v477 = vunpack.c.l.bf16 %v437
        %v478 = vunpack.c.l.bf16 %v438
        %v479 = vunpack.c.l.bf16 %v439
        %v480 = vunpack.c.l.bf16 %v440
        %v481 = vunpack.c.l.bf16 %v441
        %v482 = vunpack.c.l.bf16 %v442
        %v483 = vunpack.c.l.bf16 %v443
        %v484 = vunpack.c.l.bf16 %v444
        %v485 = vunpack.c.l.bf16 %v445
        %v486 = vunpack.c.l.bf16 %v446
        %v487 = vunpack.c.l.bf16 %v447
        %v488 = vunpack.c.l.bf16 %v448
        %v489 = vunpack.c.l.bf16 %v449
        %v490 = vunpack.c.l.bf16 %v450
        %v491 = vunpack.c.l.bf16 %v451
        %v492 = vunpack.c.l.bf16 %v452
        %v493 = vunpack.c.l.bf16 %v453
        %v494 = vunpack.c.l.bf16 %v454
        %v495 = vunpack.c.l.bf16 %v455
        %v496 = vunpack.c.l.bf16 %v456
        %v497 = vunpack.c.l.bf16 %v457
        %v498 = vunpack.c.l.bf16 %v458
        %v499 = vunpack.c.l.bf16 %v459
        %v500 = vunpack.c.l.bf16 %v460
        %v501 = vunpack.c.l.bf16 %v461
        %v502 = vunpack.c.l.bf16 %v462
        %v503 = vunpack.c.l.bf16 %v463
        %v504 = vunpack.c.l.bf16 %v464
        %v505 = vadd.f32 %v465, %v466
        %v506 = vadd.f32 %v505, %v467
        %v507 = vadd.f32 %v506, %v468
        %v508 = vadd.f32 %v507, %v469
        %v509 = vadd.f32 %v508, %v470
        %v510 = vadd.f32 %v509, %v471
        %v511 = vadd.f32 %v510, %v472
        %v512 = vadd.f32 %v511, %v473
        %v513 = vadd.f32 %v512, %v474
        %v514 = vadd.f32 %v513, %v475
        %v515 = vadd.f32 %v514, %v476
        %v516 = vadd.f32 %v515, %v477
        %v517 = vadd.f32 %v516, %v478
        %v518 = vadd.f32 %v517, %v479
        %v519 = vadd.f32 %v518, %v480
        %v520 = vadd.f32 %v519, %v481
        %v521 = vadd.f32 %v520, %v482
        %v522 = vadd.f32 %v521, %v483
        %v523 = vadd.f32 %v522, %v484
        %v524 = vadd.f32 %v523, %v485
        %v525 = vadd.f32 %v524, %v486
        %v526 = vadd.f32 %v525, %v487
        %v527 = vadd.f32 %v526, %v488
        %v528 = vadd.f32 %v527, %v489
        %v529 = vadd.f32 %v528, %v490
        %v530 = vadd.f32 %v529, %v491
        %v531 = vadd.f32 %v530, %v492
        %v532 = vadd.f32 %v531, %v493
        %v533 = vadd.f32 %v532, %v494
        %v534 = vadd.f32 %v533, %v495
        %v535 = vadd.f32 %v534, %v496
        %v536 = vadd.f32 %v535, %v497
        %v537 = vadd.f32 %v536, %v498
        %v538 = vadd.f32 %v537, %v499
        %v539 = vadd.f32 %v538, %v500
        %v540 = vadd.f32 %v539, %v501
        %v541 = vadd.f32 %v540, %v502
        %v542 = vadd.f32 %v541, %v503
        %v543 = vadd.f32 %v542, %v504
        %v544 = vrot.slane %v543, 4
        %v545 = vadd.f32 %v543, %v544
        %v546 = vrot.slane %v545, 2
        %v547 = vadd.f32 %v545, %v546
        %v548 = vrot.slane %v547, 1
        %v549 = vadd.f32 %v547, %v548
        %v550 = vadd.f32 %v381, %v549
        %s551 = sadd.s32 0, 80
        %s552 = smul.addr %s551, 4
        %s553 = scalar_lea.vmem %s152, %s552 [#allocation2]
        %v554 = vld [vmem:[%s553] sm:$0xf]
        %v555 = vld [vmem:[%s553 + $0x4] sm:$0xf]
        %v556 = vld [vmem:[%s553 + $0x8] sm:$0xf]
        %v557 = vld [vmem:[%s553 + $0xc] sm:$0xf]
        %v558 = vld [vmem:[%s553 + $0x10] sm:$0xf]
        %v559 = vld [vmem:[%s553 + $0x14] sm:$0xf]
        %v560 = vld [vmem:[%s553 + $0x18] sm:$0xf]
        %v561 = vld [vmem:[%s553 + $0x1c] sm:$0xf]
        %v562 = vld [vmem:[%s553 + $0x20] sm:$0xf]
        %v563 = vld [vmem:[%s553 + $0x24] sm:$0xf]
        %v564 = vld [vmem:[%s553 + $0x28] sm:$0xf]
        %v565 = vld [vmem:[%s553 + $0x2c] sm:$0xf]
        %v566 = vld [vmem:[%s553 + $0x30] sm:$0xf]
        %v567 = vld [vmem:[%s553 + $0x34] sm:$0xf]
        %v568 = vld [vmem:[%s553 + $0x38] sm:$0xf]
        %v569 = vld [vmem:[%s553 + $0x3c] sm:$0xf]
        %v570 = vld [vmem:[%s553 + $0x40] sm:$0xf]
        %v571 = vld [vmem:[%s553 + $0x44] sm:$0xf]
        %v572 = vld [vmem:[%s553 + $0x48] sm:$0xf]
        %v573 = vld [vmem:[%s553 + $0x4c] sm:$0xf]
        %v574 = vld [vmem:[%s553 + $0x50] sm:$0xf]
        %v575 = vld [vmem:[%s553 + $0x54] sm:$0xf]
        %v576 = vld [vmem:[%s553 + $0x58] sm:$0xf]
        %v577 = vld [vmem:[%s553 + $0x5c] sm:$0xf]
        %v578 = vld [vmem:[%s553 + $0x60] sm:$0xf]
        %v579 = vld [vmem:[%s553 + $0x64] sm:$0xf]
        %v580 = vld [vmem:[%s553 + $0x68] sm:$0xf]
        %v581 = vld [vmem:[%s553 + $0x6c] sm:$0xf]
        %v582 = vld [vmem:[%s553 + $0x70] sm:$0xf]
        %v583 = vld [vmem:[%s553 + $0x74] sm:$0xf]
        %v584 = vld [vmem:[%s553 + $0x78] sm:$0xf]
        %v585 = vld [vmem:[%s553 + $0x7c] sm:$0xf]
        %v586 = vld [vmem:[%s553 + $0x80] sm:$0xf]
        %v587 = vld [vmem:[%s553 + $0x84] sm:$0xf]
        %v588 = vld [vmem:[%s553 + $0x88] sm:$0xf]
        %v589 = vld [vmem:[%s553 + $0x8c] sm:$0xf]
        %v590 = vld [vmem:[%s553 + $0x90] sm:$0xf]
        %v591 = vld [vmem:[%s553 + $0x94] sm:$0xf]
        %v592 = vld [vmem:[%s553 + $0x98] sm:$0xf]
        %v593 = vld [vmem:[%s553 + $0x9c] sm:$0xf]
        %v594 = vmul.bf16 %v554, %v176
        %v595 = vmul.bf16 %v555, %v177
        %v596 = vmul.bf16 %v556, %v178
        %v597 = vmul.bf16 %v557, %v179
        %v598 = vmul.bf16 %v558, %v180
        %v599 = vmul.bf16 %v559, %v181
        %v600 = vmul.bf16 %v560, %v182
        %v601 = vmul.bf16 %v561, %v183
        %v602 = vmul.bf16 %v562, %v184
        %v603 = vmul.bf16 %v563, %v185
        %v604 = vmul.bf16 %v564, %v186
        %v605 = vmul.bf16 %v565, %v187
        %v606 = vmul.bf16 %v566, %v188
        %v607 = vmul.bf16 %v567, %v189
        %v608 = vmul.bf16 %v568, %v190
        %v609 = vmul.bf16 %v569, %v191
        %v610 = vmul.bf16 %v570, %v192
        %v611 = vmul.bf16 %v571, %v193
        %v612 = vmul.bf16 %v572, %v194
        %v613 = vmul.bf16 %v573, %v195
        %v614 = vmul.bf16 %v574, %v196
        %v615 = vmul.bf16 %v575, %v197
        %v616 = vmul.bf16 %v576, %v198
        %v617 = vmul.bf16 %v577, %v199
        %v618 = vmul.bf16 %v578, %v200
        %v619 = vmul.bf16 %v579, %v201
        %v620 = vmul.bf16 %v580, %v202
        %v621 = vmul.bf16 %v581, %v203
        %v622 = vmul.bf16 %v582, %v204
        %v623 = vmul.bf16 %v583, %v205
        %v624 = vmul.bf16 %v584, %v206
        %v625 = vmul.bf16 %v585, %v207
        %v626 = vmul.bf16 %v586, %v208
        %v627 = vmul.bf16 %v587, %v209
        %v628 = vmul.bf16 %v588, %v210
        %v629 = vmul.bf16 %v589, %v211
        %v630 = vmul.bf16 %v590, %v212
        %v631 = vmul.bf16 %v591, %v213
        %v632 = vmul.bf16 %v592, %v214
        %v633 = vmul.bf16 %v593, %v215
        %v634 = vunpack.c.l.bf16 %v594
        %v635 = vunpack.c.l.bf16 %v595
        %v636 = vunpack.c.l.bf16 %v596
        %v637 = vunpack.c.l.bf16 %v597
        %v638 = vunpack.c.l.bf16 %v598
        %v639 = vunpack.c.l.bf16 %v599
        %v640 = vunpack.c.l.bf16 %v600
        %v641 = vunpack.c.l.bf16 %v601
        %v642 = vunpack.c.l.bf16 %v602
        %v643 = vunpack.c.l.bf16 %v603
        %v644 = vunpack.c.l.bf16 %v604
        %v645 = vunpack.c.l.bf16 %v605
        %v646 = vunpack.c.l.bf16 %v606
        %v647 = vunpack.c.l.bf16 %v607
        %v648 = vunpack.c.l.bf16 %v608
        %v649 = vunpack.c.l.bf16 %v609
        %v650 = vunpack.c.l.bf16 %v610
        %v651 = vunpack.c.l.bf16 %v611
        %v652 = vunpack.c.l.bf16 %v612
        %v653 = vunpack.c.l.bf16 %v613
        %v654 = vunpack.c.l.bf16 %v614
        %v655 = vunpack.c.l.bf16 %v615
        %v656 = vunpack.c.l.bf16 %v616
        %v657 = vunpack.c.l.bf16 %v617
        %v658 = vunpack.c.l.bf16 %v618
        %v659 = vunpack.c.l.bf16 %v619
        %v660 = vunpack.c.l.bf16 %v620
        %v661 = vunpack.c.l.bf16 %v621
        %v662 = vunpack.c.l.bf16 %v622
        %v663 = vunpack.c.l.bf16 %v623
        %v664 = vunpack.c.l.bf16 %v624
        %v665 = vunpack.c.l.bf16 %v625
        %v666 = vunpack.c.l.bf16 %v626
        %v667 = vunpack.c.l.bf16 %v627
        %v668 = vunpack.c.l.bf16 %v628
        %v669 = vunpack.c.l.bf16 %v629
        %v670 = vunpack.c.l.bf16 %v630
        %v671 = vunpack.c.l.bf16 %v631
        %v672 = vunpack.c.l.bf16 %v632
        %v673 = vunpack.c.l.bf16 %v633
        %v674 = vadd.f32 %v634, %v635
        %v675 = vadd.f32 %v674, %v636
        %v676 = vadd.f32 %v675, %v637
        %v677 = vadd.f32 %v676, %v638
        %v678 = vadd.f32 %v677, %v639
        %v679 = vadd.f32 %v678, %v640
        %v680 = vadd.f32 %v679, %v641
        %v681 = vadd.f32 %v680, %v642
        %v682 = vadd.f32 %v681, %v643
        %v683 = vadd.f32 %v682, %v644
        %v684 = vadd.f32 %v683, %v645
        %v685 = vadd.f32 %v684, %v646
        %v686 = vadd.f32 %v685, %v647
        %v687 = vadd.f32 %v686, %v648
        %v688 = vadd.f32 %v687, %v649
        %v689 = vadd.f32 %v688, %v650
        %v690 = vadd.f32 %v689, %v651
        %v691 = vadd.f32 %v690, %v652
        %v692 = vadd.f32 %v691, %v653
        %v693 = vadd.f32 %v692, %v654
        %v694 = vadd.f32 %v693, %v655
        %v695 = vadd.f32 %v694, %v656
        %v696 = vadd.f32 %v695, %v657
        %v697 = vadd.f32 %v696, %v658
        %v698 = vadd.f32 %v697, %v659
        %v699 = vadd.f32 %v698, %v660
        %v700 = vadd.f32 %v699, %v661
        %v701 = vadd.f32 %v700, %v662
        %v702 = vadd.f32 %v701, %v663
        %v703 = vadd.f32 %v702, %v664
        %v704 = vadd.f32 %v703, %v665
        %v705 = vadd.f32 %v704, %v666
        %v706 = vadd.f32 %v705, %v667
        %v707 = vadd.f32 %v706, %v668
        %v708 = vadd.f32 %v707, %v669
        %v709 = vadd.f32 %v708, %v670
        %v710 = vadd.f32 %v709, %v671
        %v711 = vadd.f32 %v710, %v672
        %v712 = vadd.f32 %v711, %v673
        %v713 = vrot.slane %v712, 4
        %v714 = vadd.f32 %v712, %v713
        %v715 = vrot.slane %v714, 2
        %v716 = vadd.f32 %v714, %v715
        %v717 = vrot.slane %v716, 1
        %v718 = vadd.f32 %v716, %v717
        %v719 = vadd.f32 %v550, %v718
        %s720 = sadd.s32 0, 120
        %s721 = smul.addr %s720, 4
        %s722 = scalar_lea.vmem %s152, %s721 [#allocation2]
        %v723 = vld [vmem:[%s722] sm:$0xf]
        %v724 = vld [vmem:[%s722 + $0x4] sm:$0xf]
        %v725 = vld [vmem:[%s722 + $0x8] sm:$0xf]
        %v726 = vld [vmem:[%s722 + $0xc] sm:$0xf]
        %v727 = vld [vmem:[%s722 + $0x10] sm:$0xf]
        %v728 = vld [vmem:[%s722 + $0x14] sm:$0xf]
        %v729 = vld [vmem:[%s722 + $0x18] sm:$0xf]
        %v730 = vld [vmem:[%s722 + $0x1c] sm:$0xf]
        %v731 = vld [vmem:[%s722 + $0x20] sm:$0xf]
        %v732 = vld [vmem:[%s722 + $0x24] sm:$0xf]
        %v733 = vld [vmem:[%s722 + $0x28] sm:$0xf]
        %v734 = vld [vmem:[%s722 + $0x2c] sm:$0xf]
        %v735 = vld [vmem:[%s722 + $0x30] sm:$0xf]
        %v736 = vld [vmem:[%s722 + $0x34] sm:$0xf]
        %v737 = vld [vmem:[%s722 + $0x38] sm:$0xf]
        %v738 = vld [vmem:[%s722 + $0x3c] sm:$0xf]
        %v739 = vld [vmem:[%s722 + $0x40] sm:$0xf]
        %v740 = vld [vmem:[%s722 + $0x44] sm:$0xf]
        %v741 = vld [vmem:[%s722 + $0x48] sm:$0xf]
        %v742 = vld [vmem:[%s722 + $0x4c] sm:$0xf]
        %v743 = vld [vmem:[%s722 + $0x50] sm:$0xf]
        %v744 = vld [vmem:[%s722 + $0x54] sm:$0xf]
        %v745 = vld [vmem:[%s722 + $0x58] sm:$0xf]
        %v746 = vld [vmem:[%s722 + $0x5c] sm:$0xf]
        %v747 = vld [vmem:[%s722 + $0x60] sm:$0xf]
        %v748 = vld [vmem:[%s722 + $0x64] sm:$0xf]
        %v749 = vld [vmem:[%s722 + $0x68] sm:$0xf]
        %v750 = vld [vmem:[%s722 + $0x6c] sm:$0xf]
        %v751 = vld [vmem:[%s722 + $0x70] sm:$0xf]
        %v752 = vld [vmem:[%s722 + $0x74] sm:$0xf]
        %v753 = vld [vmem:[%s722 + $0x78] sm:$0xf]
        %v754 = vld [vmem:[%s722 + $0x7c] sm:$0xf]
        %v755 = vld [vmem:[%s722 + $0x80] sm:$0xf]
        %v756 = vld [vmem:[%s722 + $0x84] sm:$0xf]
        %v757 = vld [vmem:[%s722 + $0x88] sm:$0xf]
        %v758 = vld [vmem:[%s722 + $0x8c] sm:$0xf]
        %v759 = vld [vmem:[%s722 + $0x90] sm:$0xf]
        %v760 = vld [vmem:[%s722 + $0x94] sm:$0xf]
        %v761 = vld [vmem:[%s722 + $0x98] sm:$0xf]
        %v762 = vld [vmem:[%s722 + $0x9c] sm:$0xf]
        %v763 = vmul.bf16 %v723, %v176
        %v764 = vmul.bf16 %v724, %v177
        %v765 = vmul.bf16 %v725, %v178
        %v766 = vmul.bf16 %v726, %v179
        %v767 = vmul.bf16 %v727, %v180
        %v768 = vmul.bf16 %v728, %v181
        %v769 = vmul.bf16 %v729, %v182
        %v770 = vmul.bf16 %v730, %v183
        %v771 = vmul.bf16 %v731, %v184
        %v772 = vmul.bf16 %v732, %v185
        %v773 = vmul.bf16 %v733, %v186
        %v774 = vmul.bf16 %v734, %v187
        %v775 = vmul.bf16 %v735, %v188
        %v776 = vmul.bf16 %v736, %v189
        %v777 = vmul.bf16 %v737, %v190
        %v778 = vmul.bf16 %v738, %v191
        %v779 = vmul.bf16 %v739, %v192
        %v780 = vmul.bf16 %v740, %v193
        %v781 = vmul.bf16 %v741, %v194
        %v782 = vmul.bf16 %v742, %v195
        %v783 = vmul.bf16 %v743, %v196
        %v784 = vmul.bf16 %v744, %v197
        %v785 = vmul.bf16 %v745, %v198
        %v786 = vmul.bf16 %v746, %v199
        %v787 = vmul.bf16 %v747, %v200
        %v788 = vmul.bf16 %v748, %v201
        %v789 = vmul.bf16 %v749, %v202
        %v790 = vmul.bf16 %v750, %v203
        %v791 = vmul.bf16 %v751, %v204
        %v792 = vmul.bf16 %v752, %v205
        %v793 = vmul.bf16 %v753, %v206
        %v794 = vmul.bf16 %v754, %v207
        %v795 = vmul.bf16 %v755, %v208
        %v796 = vmul.bf16 %v756, %v209
        %v797 = vmul.bf16 %v757, %v210
        %v798 = vmul.bf16 %v758, %v211
        %v799 = vmul.bf16 %v759, %v212
        %v800 = vmul.bf16 %v760, %v213
        %v801 = vmul.bf16 %v761, %v214
        %v802 = vmul.bf16 %v762, %v215
        %v803 = vunpack.c.l.bf16 %v763
        %v804 = vunpack.c.l.bf16 %v764
        %v805 = vunpack.c.l.bf16 %v765
        %v806 = vunpack.c.l.bf16 %v766
        %v807 = vunpack.c.l.bf16 %v767
        %v808 = vunpack.c.l.bf16 %v768
        %v809 = vunpack.c.l.bf16 %v769
        %v810 = vunpack.c.l.bf16 %v770
        %v811 = vunpack.c.l.bf16 %v771
        %v812 = vunpack.c.l.bf16 %v772
        %v813 = vunpack.c.l.bf16 %v773
        %v814 = vunpack.c.l.bf16 %v774
        %v815 = vunpack.c.l.bf16 %v775
        %v816 = vunpack.c.l.bf16 %v776
        %v817 = vunpack.c.l.bf16 %v777
        %v818 = vunpack.c.l.bf16 %v778
        %v819 = vunpack.c.l.bf16 %v779
        %v820 = vunpack.c.l.bf16 %v780
        %v821 = vunpack.c.l.bf16 %v781
        %v822 = vunpack.c.l.bf16 %v782
        %v823 = vunpack.c.l.bf16 %v783
        %v824 = vunpack.c.l.bf16 %v784
        %v825 = vunpack.c.l.bf16 %v785
        %v826 = vunpack.c.l.bf16 %v786
        %v827 = vunpack.c.l.bf16 %v787
        %v828 = vunpack.c.l.bf16 %v788
        %v829 = vunpack.c.l.bf16 %v789
        %v830 = vunpack.c.l.bf16 %v790
        %v831 = vunpack.c.l.bf16 %v791
        %v832 = vunpack.c.l.bf16 %v792
        %v833 = vunpack.c.l.bf16 %v793
        %v834 = vunpack.c.l.bf16 %v794
        %v835 = vunpack.c.l.bf16 %v795
        %v836 = vunpack.c.l.bf16 %v796
        %v837 = vunpack.c.l.bf16 %v797
        %v838 = vunpack.c.l.bf16 %v798
        %v839 = vunpack.c.l.bf16 %v799
        %v840 = vunpack.c.l.bf16 %v800
        %v841 = vunpack.c.l.bf16 %v801
        %v842 = vunpack.c.l.bf16 %v802
        %v843 = vadd.f32 %v803, %v804
        %v844 = vadd.f32 %v843, %v805
        %v845 = vadd.f32 %v844, %v806
        %v846 = vadd.f32 %v845, %v807
        %v847 = vadd.f32 %v846, %v808
        %v848 = vadd.f32 %v847, %v809
        %v849 = vadd.f32 %v848, %v810
        %v850 = vadd.f32 %v849, %v811
        %v851 = vadd.f32 %v850, %v812
        %v852 = vadd.f32 %v851, %v813
        %v853 = vadd.f32 %v852, %v814
        %v854 = vadd.f32 %v853, %v815
        %v855 = vadd.f32 %v854, %v816
        %v856 = vadd.f32 %v855, %v817
        %v857 = vadd.f32 %v856, %v818
        %v858 = vadd.f32 %v857, %v819
        %v859 = vadd.f32 %v858, %v820
        %v860 = vadd.f32 %v859, %v821
        %v861 = vadd.f32 %v860, %v822
        %v862 = vadd.f32 %v861, %v823
        %v863 = vadd.f32 %v862, %v824
        %v864 = vadd.f32 %v863, %v825
        %v865 = vadd.f32 %v864, %v826
        %v866 = vadd.f32 %v865, %v827
        %v867 = vadd.f32 %v866, %v828
        %v868 = vadd.f32 %v867, %v829
        %v869 = vadd.f32 %v868, %v830
        %v870 = vadd.f32 %v869, %v831
        %v871 = vadd.f32 %v870, %v832
        %v872 = vadd.f32 %v871, %v833
        %v873 = vadd.f32 %v872, %v834
        %v874 = vadd.f32 %v873, %v835
        %v875 = vadd.f32 %v874, %v836
        %v876 = vadd.f32 %v875, %v837
        %v877 = vadd.f32 %v876, %v838
        %v878 = vadd.f32 %v877, %v839
        %v879 = vadd.f32 %v878, %v840
        %v880 = vadd.f32 %v879, %v841
        %v881 = vadd.f32 %v880, %v842
        %v882 = vrot.slane %v881, 4
        %v883 = vadd.f32 %v881, %v882
        %v884 = vrot.slane %v883, 2
        %v885 = vadd.f32 %v883, %v884
        %v886 = vrot.slane %v885, 1
        %v887 = vadd.f32 %v885, %v886
        %v888 = vadd.f32 %v719, %v887
        %889 = vst [vmem:[%s175] sm:$0x1] %v888
        %s890 = sand.u32 %s75, 1
        %s891 = scalar_lea.sflag [#allocation4], %s890
        %s892 = sand.u32 %s75, 1
        %s893 = scalar_lea.vmem [#allocation7], %s892
        // Predicated region
        $region37: #{tpu_custom_call.1} parent=27 // pred_check
          %p894 = pneg %p85
        $region38: #{tpu_custom_call.1} parent=27 // pred_check_branch
          %896 = sbr.rel (%p894) target = $region40
        $region39: #{tpu_custom_call.1} parent=27 // pred_region
          %s898 = ssub.s32 16, 16
          %899 = vsyncadd %s891, %s898
          %s900 = smul.addr %s20, 16
          %s901 = scalar_lea.hbm %s2, %s900
          %s903 = sshll.u32 %s893, 4
          %s904 = int_to_ptr.vmem [resolvable:$true] %s903
          %906 = dma.vmem_to_hbm [thread:$0]  %s904, 16, %s901, %s891
        $region40: #{tpu_custom_call.1} parent=27 // pred_fallthru
          _
      $region28: #{tpu_custom_call.1} parent=5 // pred_fallthru
        _
      %p907 = scmp.le.s32.totalorder 2, %s15
      // Predicated region
      $region41: #{tpu_custom_call.1} parent=5 // pred_check
        %p908 = pneg %p907
      $region42: #{tpu_custom_call.1} parent=5 // pred_check_branch
        %910 = sbr.rel (%p908) target = $region44
      $region43: #{tpu_custom_call.1} parent=5 // pred_region
        %s911 = ssub.s32 %s15, 2
        // Predicated region
        $region45: #{tpu_custom_call.1} parent=43 // pred_check
          %p912 = pneg %p91
        $region46: #{tpu_custom_call.1} parent=43 // pred_check_branch
          %914 = sbr.rel (%p912) target = $region48
        $region47: #{tpu_custom_call.1} parent=43 // pred_region
          %s915 = sand.u32 %s76, 1
          %s916 = scalar_lea.sflag [#allocation4], %s915
          %s917 = sand.u32 %s76, 1
          %s918 = scalar_lea.vmem [#allocation7], %s917
          %919 = dma.done %s916, 16
        $region48: #{tpu_custom_call.1} parent=43 // pred_fallthru
          _
      $region44: #{tpu_custom_call.1} parent=5 // pred_fallthru
        _
    $region6: #{tpu_custom_call.1} parent=1 // loop_footer
      %s19 = sadd.s32 1, %s15
    $region7: #{tpu_custom_call.1} parent=1 // loop_footer_branch
      %14 = sbr.rel target = $region3
    $region8: #{tpu_custom_call.1} parent=1 // loop_exit
      _
    %920 = vsyncpa [#allocation3], 1
    %s921 = scalar_lea.sflag [#allocation3], 1
    %922 = vsyncpa %s921, 1
    %923 = vsyncpa [#allocation6], 1
    %924 = vsyncpa [#allocation4], 1
    %s925 = scalar_lea.sflag [#allocation4], 1
    %926 = vsyncpa %s925, 1

</llo_original>
